<compile_context>
chip_gen: v5e
topology: v5e:2x2
jax: 0.10.0
libtpu: 0.0.40
codegen_flags: <defaults>
</compile_context>

<pallas_src>
import math

import numpy as np
import jax
import jax.numpy as jnp
from jax import lax
from jax.experimental import pallas as pl
from jax.experimental.pallas import tpu as pltpu

# ---- static configuration (small shapes consistent with the module) ----
BATCH = 2
SEQ = 16
HIDDEN = 32
NUM_HEADS = 2
HEAD_DIM = HIDDEN // NUM_HEADS            # 16
MLP_RATIO = 2
MLP_HIDDEN = HIDDEN * MLP_RATIO           # 64
LN_EPS = 1e-5

BS = BATCH * SEQ                          # 32 tokens total (flattened)
QKV = 3 * HEAD_DIM                        # 48 fused q|k|v columns per head
G = NUM_HEADS * BATCH                     # 4 attention groups, head-major g = n*BATCH + b

# Review-approved accuracy/perf tradeoff: bf16 MXU inputs, f32 accumulation.
# Set to jnp.float32 to recover exact-f32 matmuls.
MATMUL_DTYPE = jnp.bfloat16

# ---- bf16 matmul-weight slab layout: shape (W_ROWS, W_LANES) ----
W_LANES = NUM_HEADS * QKV                 # 96
W_ROW_QKV = 0                             # rows [0,32):   fused qkv weight (H, NH*QKV), q pre-scaled
W_ROW_W1 = HIDDEN                         # rows [32,64):  dense1 weight (H, Hm)
W_ROW_W2 = W_ROW_W1 + HIDDEN              # rows [64,128): dense2 weight (Hm, H)
W_ROW_WO = W_ROW_W2 + MLP_HIDDEN          # rows [128,160): out-proj weight (NH*HD, H), head-major rows
W_ROWS = W_ROW_WO + HIDDEN                # 160

# ---- f32 elementwise-parameter slab: every param pre-broadcast to BS rows ----
# (each block starts at a multiple of BS=32 rows -> 8-sublane aligned; ~147 KB, trivial vs VMEM)
P_LANES = W_LANES                         # 96


def _blk(i):
    return i * BS


P_LN1G, P_LN1B, P_LN2G, P_LN2B = _blk(0), _blk(1), _blk(2), _blk(3)
P_BQKV, P_BO, P_B1 = _blk(4), _blk(5), _blk(6)
P_TAP0, P_TAP1, P_TAP2, P_DWB = _blk(7), _blk(8), _blk(9), _blk(10)
P_B2 = _blk(11)
P_ROWS = _blk(12)                         # 384


def _layernorm(v, g, b):
    mu = jnp.mean(v, axis=-1, keepdims=True)
    var = jnp.mean(jnp.square(v - mu), axis=-1, keepdims=True)
    return (v - mu) * lax.rsqrt(var + LN_EPS) * g + b


def segformer_layer_kernel(x_ref, w_ref, p_ref, out_ref):
    x = x_ref[...]                                                   # (BS, H) f32

    # ---------------- LayerNorm 1 ----------------
    ln1 = _layernorm(x,
                     p_ref[P_LN1G:P_LN1G + BS, 0:HIDDEN],
                     p_ref[P_LN1B:P_LN1B + BS, 0:HIDDEN])            # (BS, H)

    # ---------------- Efficient self-attention (sr_ratio = 1) ----------------
    # Single fused QKV projection for ALL heads: (32,32)@(32,96), bf16 in / f32 acc.
    # 1/sqrt(HEAD_DIM) is folded into the q weight/bias columns host-side.
    w_qkv = w_ref[W_ROW_QKV:W_ROW_QKV + HIDDEN, :]                   # (H, 96) bf16
    qkv = jnp.dot(ln1.astype(MATMUL_DTYPE), w_qkv,
                  preferred_element_type=jnp.float32)
    qkv = qkv + p_ref[P_BQKV:P_BQKV + BS, :]                         # (BS, 96) f32

    # Regroup to (G, S, 48), g = head*BATCH + batch.  Lane slices per head and an
    # 8-aligned 32 -> 2x16 sublane split (near-free), no broadcast materialization.
    qkv_g = jnp.concatenate(
        [qkv[:, n * QKV:(n + 1) * QKV].reshape(BATCH, SEQ, QKV)
         for n in range(NUM_HEADS)], axis=0)                         # (G, S, 48)
    q = qkv_g[:, :, 0:HEAD_DIM]
    k = qkv_g[:, :, HEAD_DIM:2 * HEAD_DIM]
    v = qkv_g[:, :, 2 * HEAD_DIM:3 * HEAD_DIM]

    scores = jnp.einsum('gqd,gkd->gqk',
                        q.astype(MATMUL_DTYPE), k.astype(MATMUL_DTYPE),
                        preferred_element_type=jnp.float32)          # (G, S, S)
    scores = scores - jnp.max(scores, axis=-1, keepdims=True)
    e = jnp.exp(scores)
    denom = jnp.sum(e, axis=-1, keepdims=True)
    # EUP approximate reciprocal (flagged: ~1e-4 rel. deviation vs exact division)
    probs = e * pl.reciprocal(denom, approx=True)
    ctx = jnp.einsum('gqk,gkd->gqd',
                     probs.astype(MATMUL_DTYPE), v.astype(MATMUL_DTYPE),
                     preferred_element_type=jnp.float32)             # (G, S, HD)

    # Per-head output projection; summing head partials == concat(heads) @ Wo,
    # so no lane-axis concatenation and no batch-replicated Wo.
    ctx_nh = ctx.reshape(NUM_HEADS, BS, HEAD_DIM)                    # 8-aligned sublane merge
    w_o = w_ref[W_ROW_WO:W_ROW_WO + HIDDEN, 0:HIDDEN].reshape(
        NUM_HEADS, HEAD_DIM, HIDDEN)                                 # (NH, HD, H) bf16
    part = jnp.einsum('nsd,ndh->nsh',
                      ctx_nh.astype(MATMUL_DTYPE), w_o,
                      preferred_element_type=jnp.float32)            # (NH, BS, H)
    attn_out = part[0]
    for n in range(1, NUM_HEADS):
        attn_out = attn_out + part[n]
    attn_out = attn_out + p_ref[P_BO:P_BO + BS, 0:HIDDEN]            # (BS, H)

    hs1 = attn_out + x                                               # residual 1

    # ---------------- LayerNorm 2 + MixFFN ----------------
    ln2 = _layernorm(hs1,
                     p_ref[P_LN2G:P_LN2G + BS, 0:HIDDEN],
                     p_ref[P_LN2B:P_LN2B + BS, 0:HIDDEN])
    w1 = w_ref[W_ROW_W1:W_ROW_W1 + HIDDEN, 0:MLP_HIDDEN]             # (H, Hm) bf16
    y1 = jnp.dot(ln2.astype(MATMUL_DTYPE), w1,
                 preferred_element_type=jnp.float32)
    y1 = y1 + p_ref[P_B1:P_B1 + BS, 0:MLP_HIDDEN]                    # (BS, Hm)

    # Depthwise Conv1d(k=3, stride=1, pad=1) over the sequence axis of the
    # flattened (B*S, Hm) layout.  Shifts via XLU roll; the batch-boundary
    # zero masks are folded into tap0/tap2 host-side (trace-time constants),
    # so there is no iota / modulo / compare on the VALU path.
    x_prev = pltpu.roll(y1, 1, axis=0)
    x_next = pltpu.roll(y1, BS - 1, axis=0)
    y_dw = (x_prev * p_ref[P_TAP0:P_TAP0 + BS, 0:MLP_HIDDEN]
            + y1 * p_ref[P_TAP1:P_TAP1 + BS, 0:MLP_HIDDEN]
            + x_next * p_ref[P_TAP2:P_TAP2 + BS, 0:MLP_HIDDEN]
            + p_ref[P_DWB:P_DWB + BS, 0:MLP_HIDDEN])

    # GELU, tanh approximation (EUP) — review-approved tradeoff vs exact-erf nn.GELU().
    c0 = math.sqrt(2.0 / math.pi)
    act = 0.5 * y_dw * (1.0 + jnp.tanh(c0 * (y_dw + 0.044715 * (y_dw * y_dw * y_dw))))

    w2 = w_ref[W_ROW_W2:W_ROW_W2 + MLP_HIDDEN, 0:HIDDEN]             # (Hm, H) bf16
    y2 = jnp.dot(act.astype(MATMUL_DTYPE), w2,
                 preferred_element_type=jnp.float32)
    y2 = y2 + p_ref[P_B2:P_B2 + BS, 0:HIDDEN]

    out_ref[...] = (y2 + hs1).astype(out_ref.dtype)                  # residual 2


def pack_params(p):
    """Pack the module parameters into two slabs (host side, once per call)."""
    scale = 1.0 / math.sqrt(HEAD_DIM)
    wq = p["wq"] * scale          # fold attention scale into Q weights/bias
    bq = p["bq"] * scale

    # fused QKV columns, head-major: head n -> columns [n*48, n*48+48) = [q_n | k_n | v_n]
    w_cols, b_cols = [], []
    for n in range(NUM_HEADS):
        sl = slice(n * HEAD_DIM, (n + 1) * HEAD_DIM)
        w_cols += [wq[:, sl], p["wk"][:, sl], p["wv"][:, sl]]
        b_cols += [bq[:, sl], p["bk"][:, sl], p["bv"][:, sl]]
    w_qkv = jnp.concatenate(w_cols, axis=1)                          # (H, 96)
    b_qkv = jnp.concatenate(b_cols, axis=1)                          # (1, 96)

    def wpad(m):
        return jnp.pad(m, ((0, 0), (0, W_LANES - m.shape[1])))

    # bf16 matmul-weight slab (no per-batch duplication).
    w_slab = jnp.concatenate([
        wpad(w_qkv),                 # rows [0, 32)
        wpad(p["w1"]),               # rows [32, 64)
        wpad(p["w2"]),               # rows [64, 128)
        wpad(p["wo"]),               # rows [128, 160)  (rows already head-major)
    ], axis=0).astype(MATMUL_DTYPE)
    assert w_slab.shape == (W_ROWS, W_LANES)

    # f32 elementwise-parameter slab; every block pre-broadcast to BS rows so the
    # kernel does plain aligned (BS, W) loads (no sublane broadcasts).
    def lane_pad(m):
        return jnp.pad(m, ((0, 0), (0, P_LANES - m.shape[1])))

    def row_bcast(v):
        v = jnp.asarray(v).reshape(1, -1)
        return lane_pad(jnp.broadcast_to(v, (BS, v.shape[1])))

    # depthwise-conv taps with the sequence-boundary masks folded in (trace-time constants)
    pos = np.arange(BS) % SEQ
    mask_prev = jnp.asarray((pos != 0).astype(np.float32)[:, None])          # (BS, 1)
    mask_next = jnp.asarray((pos != SEQ - 1).astype(np.float32)[:, None])    # (BS, 1)
    tap0 = lane_pad(mask_prev * p["dw_w"][0:1, :])                           # (BS, Hm)
    tap1 = lane_pad(jnp.broadcast_to(p["dw_w"][1:2, :], (BS, MLP_HIDDEN)))
    tap2 = lane_pad(mask_next * p["dw_w"][2:3, :])

    p_slab = jnp.concatenate([
        row_bcast(p["ln1_g"]), row_bcast(p["ln1_b"]),
        row_bcast(p["ln2_g"]), row_bcast(p["ln2_b"]),
        row_bcast(b_qkv),
        row_bcast(p["bo"]),
        row_bcast(p["b1"]),
        tap0, tap1, tap2,
        row_bcast(p["dw_b"]),
        row_bcast(p["b2"]),
    ], axis=0).astype(jnp.float32)
    assert p_slab.shape == (P_ROWS, P_LANES)
    return w_slab, p_slab


def segformer_layer(x, params):
    """x: (B, S, H) float32.  Returns (B, S, H)."""
    B, S, H = x.shape
    assert (B, S, H) == (BATCH, SEQ, HIDDEN)
    x_flat = x.reshape(BS, HIDDEN)
    w_slab, p_slab = pack_params(params)

    flops = int(
        2 * BS * HIDDEN * (NUM_HEADS * QKV)   # fused qkv projection
        + 2 * 2 * G * SEQ * SEQ * HEAD_DIM    # scores + context
        + 2 * NUM_HEADS * BS * HEAD_DIM * HIDDEN   # output projection
        + 2 * 2 * BS * HIDDEN * MLP_HIDDEN    # dense1 + dense2
        + 8 * BS * MLP_HIDDEN                 # depthwise conv + gelu poly (approx)
        + 10 * BS * HIDDEN                    # layernorms / residuals (approx)
    )
    transcendentals = int(G * SEQ * SEQ + BS * MLP_HIDDEN + 4 * BS)   # exp + tanh + rsqrt + recip
    bytes_accessed = int(4 * BS * HIDDEN * 2          # x + out
                         + 2 * W_ROWS * W_LANES       # bf16 weight slab
                         + 4 * P_ROWS * P_LANES)      # f32 param slab

    # grid stays (1,): at 32 tokens the kernel is launch-overhead bound (per review,
    # splitting it would be pure overhead).  When scaled up, add a "parallel"
    # token-tile axis (uses v7x's second TensorCore) and a lane-dense output layout.
    out_flat = pl.pallas_call(
        segformer_layer_kernel,
        out_shape=jax.ShapeDtypeStruct((BS, HIDDEN), x.dtype),
        grid=(1,),
        in_specs=[
            pl.BlockSpec((BS, HIDDEN), lambda i: (0, 0)),
            pl.BlockSpec((W_ROWS, W_LANES), lambda i: (0, 0)),
            pl.BlockSpec((P_ROWS, P_LANES), lambda i: (0, 0)),
        ],
        out_specs=pl.BlockSpec((BS, HIDDEN), lambda i: (0, 0)),
        compiler_params=pltpu.CompilerParams(dimension_semantics=("arbitrary",)),
        cost_estimate=pl.CostEstimate(flops=flops,
                                      transcendentals=transcendentals,
                                      bytes_accessed=bytes_accessed),
    )(x_flat, w_slab, p_slab)
    return out_flat.reshape(B, S, H)


def make_params(key):
    """Deterministic synthetic parameters (shapes from the module __init__)."""
    ks = jax.random.split(key, 16)
    f32 = jnp.float32
    scale = 0.05

    def rnd(k, shape):
        return scale * jax.random.normal(k, shape, dtype=f32)

    return {
        # LayerNorms
        "ln1_g": jnp.ones((1, HIDDEN), f32), "ln1_b": jnp.zeros((1, HIDDEN), f32),
        "ln2_g": jnp.ones((1, HIDDEN), f32), "ln2_b": jnp.zeros((1, HIDDEN), f32),
        # attention projections, stored as (in, out) == PyTorch W^T
        "wq": rnd(ks[0], (HIDDEN, HIDDEN)), "bq": rnd(ks[1], (1, HIDDEN)),
        "wk": rnd(ks[2], (HIDDEN, HIDDEN)), "bk": rnd(ks[3], (1, HIDDEN)),
        "wv": rnd(ks[4], (HIDDEN, HIDDEN)), "bv": rnd(ks[5], (1, HIDDEN)),
        "wo": rnd(ks[6], (HIDDEN, HIDDEN)), "bo": rnd(ks[7], (1, HIDDEN)),
        # MixFFN
        "w1": rnd(ks[8], (HIDDEN, MLP_HIDDEN)), "b1": rnd(ks[9], (1, MLP_HIDDEN)),
        # depthwise conv weight: PyTorch (Hm, 1, 3) stored as (3, Hm)
        "dw_w": rnd(ks[10], (3, MLP_HIDDEN)), "dw_b": rnd(ks[11], (1, MLP_HIDDEN)),
        "w2": rnd(ks[12], (MLP_HIDDEN, HIDDEN)), "b2": rnd(ks[13], (1, HIDDEN)),
    }


if __name__ == "__main__":
    key = jax.random.PRNGKey(0)
    k_x, k_p = jax.random.split(key)
    x = jax.random.normal(k_x, (BATCH, SEQ, HIDDEN), dtype=jnp.float32)
    params = make_params(k_p)

    out = segformer_layer(x, params)
    out = jax.block_until_ready(out)
    assert out.shape == (BATCH, SEQ, HIDDEN)
    assert bool(jnp.all(jnp.isfinite(out)))
    print("KERNEL_OK")
</pallas_src>

<mosaic_0001>
module attributes {stable_mosaic.version = 11 : i64} {
  func.func @segformer_layer_kernel(%arg0: i32, %arg1: memref<32x32xf32, #tpu.memory_space<vmem>>, %arg2: memref<160x96xbf16, #tpu.memory_space<vmem>>, %arg3: memref<384x96xf32, #tpu.memory_space<vmem>>, %arg4: memref<32x32xf32, #tpu.memory_space<vmem>>) attributes {dimension_semantics = [#tpu.dimension_semantics<arbitrary>], iteration_bounds = array<i64: 1>, scalar_prefetch = 0 : i64, scratch_operands = 0 : i64, tpu.core_type = #tpu.core_type<tc>, window_params = [{pipeline_mode = #tpu.pipeline_mode<synchronous>, transform_indices = @transform_0, window_bounds = array<i64: 32, 32>}, {pipeline_mode = #tpu.pipeline_mode<synchronous>, transform_indices = @transform_1, window_bounds = array<i64: 160, 96>}, {pipeline_mode = #tpu.pipeline_mode<synchronous>, transform_indices = @transform_2, window_bounds = array<i64: 384, 96>}, {pipeline_mode = #tpu.pipeline_mode<synchronous>, transform_indices = @transform_3, window_bounds = array<i64: 32, 32>}]} {
    %c0 = arith.constant 0 : index
    %c0_0 = arith.constant 0 : index
    %0 = vector.load %arg1[%c0, %c0_0] : memref<32x32xf32, #tpu.memory_space<vmem>>, vector<32x32xf32>
    %c0_1 = arith.constant 0 : index
    %c0_2 = arith.constant 0 : index
    %1 = vector.load %arg3[%c0_1, %c0_2] : memref<384x96xf32, #tpu.memory_space<vmem>>, vector<32x32xf32>
    %c32 = arith.constant 32 : index
    %c0_3 = arith.constant 0 : index
    %2 = vector.load %arg3[%c32, %c0_3] : memref<384x96xf32, #tpu.memory_space<vmem>>, vector<32x32xf32>
    %cst = arith.constant dense<0.000000e+00> : vector<32xf32>
    %3 = vector.multi_reduction <add>, %0, %cst [1] : vector<32x32xf32> to vector<32xf32>
    %4 = vector.shape_cast %3 : vector<32xf32> to vector<32x1xf32>
    %cst_4 = arith.constant 3.200000e+01 : f32
    %5 = vector.broadcast %cst_4 : f32 to vector<32x1xf32>
    %6 = arith.divf %4, %5 : vector<32x1xf32>
    %7 = vector.broadcast %6 : vector<32x1xf32> to vector<32x32xf32>
    %8 = arith.subf %0, %7 : vector<32x32xf32>
    %9 = arith.mulf %8, %8 : vector<32x32xf32>
    %cst_5 = arith.constant dense<0.000000e+00> : vector<32xf32>
    %10 = vector.multi_reduction <add>, %9, %cst_5 [1] : vector<32x32xf32> to vector<32xf32>
    %11 = vector.shape_cast %10 : vector<32xf32> to vector<32x1xf32>
    %cst_6 = arith.constant 3.200000e+01 : f32
    %12 = vector.broadcast %cst_6 : f32 to vector<32x1xf32>
    %13 = arith.divf %11, %12 : vector<32x1xf32>
    %14 = vector.broadcast %6 : vector<32x1xf32> to vector<32x32xf32>
    %15 = arith.subf %0, %14 : vector<32x32xf32>
    %cst_7 = arith.constant 9.99999974E-6 : f32
    %16 = vector.broadcast %cst_7 : f32 to vector<32x1xf32>
    %17 = arith.addf %13, %16 : vector<32x1xf32>
    %18 = math.rsqrt %17 : vector<32x1xf32>
    %19 = vector.broadcast %18 : vector<32x1xf32> to vector<32x32xf32>
    %20 = arith.mulf %15, %19 : vector<32x32xf32>
    %21 = arith.mulf %20, %1 : vector<32x32xf32>
    %22 = arith.addf %21, %2 : vector<32x32xf32>
    %c0_8 = arith.constant 0 : index
    %c0_9 = arith.constant 0 : index
    %23 = vector.load %arg2[%c0_8, %c0_9] : memref<160x96xbf16, #tpu.memory_space<vmem>>, vector<32x96xbf16>
    %24 = arith.truncf %22 : vector<32x32xf32> to vector<32x32xbf16>
    %cst_10 = arith.constant dense<0.000000e+00> : vector<32x96xf32>
    %25 = tpu.matmul %24, %23, %cst_10 {dimension_numbers = #tpu.dot_dimension_numbers<[1], [0], [0], [1], [0, 0, 1, 1], [], []>} : vector<32x32xbf16>, vector<32x96xbf16>, vector<32x96xf32> -> vector<32x96xf32>
    %c128 = arith.constant 128 : index
    %c0_11 = arith.constant 0 : index
    %26 = vector.load %arg3[%c128, %c0_11] : memref<384x96xf32, #tpu.memory_space<vmem>>, vector<32x96xf32>
    %27 = arith.addf %25, %26 : vector<32x96xf32>
    %28 = vector.extract_strided_slice %27 {offsets = [0, 0], sizes = [32, 48], strides = [1, 1]} : vector<32x96xf32> to vector<32x48xf32>
    %29 = vector.shape_cast %28 : vector<32x48xf32> to vector<2x16x48xf32>
    %30 = vector.extract_strided_slice %27 {offsets = [0, 48], sizes = [32, 48], strides = [1, 1]} : vector<32x96xf32> to vector<32x48xf32>
    %31 = vector.shape_cast %30 : vector<32x48xf32> to vector<2x16x48xf32>
    %32 = tpu.concatenate %29, %31 in 0 : vector<2x16x48xf32>, vector<2x16x48xf32> -> vector<4x16x48xf32>
    %33 = vector.extract_strided_slice %32 {offsets = [0, 0, 0], sizes = [4, 16, 16], strides = [1, 1, 1]} : vector<4x16x48xf32> to vector<4x16x16xf32>
    %34 = vector.extract_strided_slice %32 {offsets = [0, 0, 16], sizes = [4, 16, 16], strides = [1, 1, 1]} : vector<4x16x48xf32> to vector<4x16x16xf32>
    %35 = vector.extract_strided_slice %32 {offsets = [0, 0, 32], sizes = [4, 16, 16], strides = [1, 1, 1]} : vector<4x16x48xf32> to vector<4x16x16xf32>
    %36 = arith.truncf %33 : vector<4x16x16xf32> to vector<4x16x16xbf16>
    %37 = arith.truncf %34 : vector<4x16x16xf32> to vector<4x16x16xbf16>
    "tpu.trace_start"() <{level = 10 : i32, message = "gqd,gkd->gqk"}> : () -> ()
    %cst_12 = arith.constant dense<0.000000e+00> : vector<4x16x16xf32>
    %38 = tpu.matmul %36, %37, %cst_12 {dimension_numbers = #tpu.dot_dimension_numbers<[2], [2], [1], [1], [0, 0, 0, 1, 1, 1], [0], [0]>} : vector<4x16x16xbf16>, vector<4x16x16xbf16>, vector<4x16x16xf32> -> vector<4x16x16xf32>
    "tpu.trace_stop"() : () -> ()
    %cst_13 = arith.constant dense<0xFF800000> : vector<4x16xf32>
    %39 = vector.multi_reduction <maximumf>, %38, %cst_13 [2] : vector<4x16x16xf32> to vector<4x16xf32>
    %40 = vector.shape_cast %39 : vector<4x16xf32> to vector<4x16x1xf32>
    %41 = vector.broadcast %40 : vector<4x16x1xf32> to vector<4x16x16xf32>
    %42 = arith.subf %38, %41 : vector<4x16x16xf32>
    %43 = math.exp %42 : vector<4x16x16xf32>
    %cst_14 = arith.constant dense<0.000000e+00> : vector<4x16xf32>
    %44 = vector.multi_reduction <add>, %43, %cst_14 [2] : vector<4x16x16xf32> to vector<4x16xf32>
    %45 = vector.shape_cast %44 : vector<4x16xf32> to vector<4x16x1xf32>
    %46 = tpu.reciprocal %45 {approx = true} : vector<4x16x1xf32> -> vector<4x16x1xf32>
    %47 = vector.broadcast %46 : vector<4x16x1xf32> to vector<4x16x16xf32>
    %48 = arith.mulf %43, %47 : vector<4x16x16xf32>
    %49 = arith.truncf %48 : vector<4x16x16xf32> to vector<4x16x16xbf16>
    %50 = arith.truncf %35 : vector<4x16x16xf32> to vector<4x16x16xbf16>
    "tpu.trace_start"() <{level = 10 : i32, message = "gqk,gkd->gqd"}> : () -> ()
    %cst_15 = arith.constant dense<0.000000e+00> : vector<4x16x16xf32>
    %51 = tpu.matmul %49, %50, %cst_15 {dimension_numbers = #tpu.dot_dimension_numbers<[2], [1], [1], [2], [0, 0, 0, 1, 1, 2], [0], [0]>} : vector<4x16x16xbf16>, vector<4x16x16xbf16>, vector<4x16x16xf32> -> vector<4x16x16xf32>
    "tpu.trace_stop"() : () -> ()
    %52 = vector.shape_cast %51 : vector<4x16x16xf32> to vector<2x32x16xf32>
    %c128_16 = arith.constant 128 : index
    %c0_17 = arith.constant 0 : index
    %53 = vector.load %arg2[%c128_16, %c0_17] : memref<160x96xbf16, #tpu.memory_space<vmem>>, vector<32x32xbf16>
    %54 = vector.shape_cast %53 : vector<32x32xbf16> to vector<2x16x32xbf16>
    %55 = arith.truncf %52 : vector<2x32x16xf32> to vector<2x32x16xbf16>
    "tpu.trace_start"() <{level = 10 : i32, message = "nsd,ndh->nsh"}> : () -> ()
    %cst_18 = arith.constant dense<0.000000e+00> : vector<2x32x32xf32>
    %56 = tpu.matmul %55, %54, %cst_18 {dimension_numbers = #tpu.dot_dimension_numbers<[2], [1], [1], [2], [0, 0, 0, 1, 1, 2], [0], [0]>} : vector<2x32x16xbf16>, vector<2x16x32xbf16>, vector<2x32x32xf32> -> vector<2x32x32xf32>
    "tpu.trace_stop"() : () -> ()
    %57 = vector.extract_strided_slice %56 {offsets = [0, 0, 0], sizes = [1, 32, 32], strides = [1, 1, 1]} : vector<2x32x32xf32> to vector<1x32x32xf32>
    %58 = vector.shape_cast %57 : vector<1x32x32xf32> to vector<32x32xf32>
    %59 = vector.extract_strided_slice %56 {offsets = [1, 0, 0], sizes = [1, 32, 32], strides = [1, 1, 1]} : vector<2x32x32xf32> to vector<1x32x32xf32>
    %60 = vector.shape_cast %59 : vector<1x32x32xf32> to vector<32x32xf32>
    %61 = arith.addf %58, %60 : vector<32x32xf32>
    %c160 = arith.constant 160 : index
    %c0_19 = arith.constant 0 : index
    %62 = vector.load %arg3[%c160, %c0_19] : memref<384x96xf32, #tpu.memory_space<vmem>>, vector<32x32xf32>
    %63 = arith.addf %61, %62 : vector<32x32xf32>
    %64 = arith.addf %63, %0 : vector<32x32xf32>
    %c64 = arith.constant 64 : index
    %c0_20 = arith.constant 0 : index
    %65 = vector.load %arg3[%c64, %c0_20] : memref<384x96xf32, #tpu.memory_space<vmem>>, vector<32x32xf32>
    %c96 = arith.constant 96 : index
    %c0_21 = arith.constant 0 : index
    %66 = vector.load %arg3[%c96, %c0_21] : memref<384x96xf32, #tpu.memory_space<vmem>>, vector<32x32xf32>
    %cst_22 = arith.constant dense<0.000000e+00> : vector<32xf32>
    %67 = vector.multi_reduction <add>, %64, %cst_22 [1] : vector<32x32xf32> to vector<32xf32>
    %68 = vector.shape_cast %67 : vector<32xf32> to vector<32x1xf32>
    %cst_23 = arith.constant 3.200000e+01 : f32
    %69 = vector.broadcast %cst_23 : f32 to vector<32x1xf32>
    %70 = arith.divf %68, %69 : vector<32x1xf32>
    %71 = vector.broadcast %70 : vector<32x1xf32> to vector<32x32xf32>
    %72 = arith.subf %64, %71 : vector<32x32xf32>
    %73 = arith.mulf %72, %72 : vector<32x32xf32>
    %cst_24 = arith.constant dense<0.000000e+00> : vector<32xf32>
    %74 = vector.multi_reduction <add>, %73, %cst_24 [1] : vector<32x32xf32> to vector<32xf32>
    %75 = vector.shape_cast %74 : vector<32xf32> to vector<32x1xf32>
    %cst_25 = arith.constant 3.200000e+01 : f32
    %76 = vector.broadcast %cst_25 : f32 to vector<32x1xf32>
    %77 = arith.divf %75, %76 : vector<32x1xf32>
    %78 = vector.broadcast %70 : vector<32x1xf32> to vector<32x32xf32>
    %79 = arith.subf %64, %78 : vector<32x32xf32>
    %cst_26 = arith.constant 9.99999974E-6 : f32
    %80 = vector.broadcast %cst_26 : f32 to vector<32x1xf32>
    %81 = arith.addf %77, %80 : vector<32x1xf32>
    %82 = math.rsqrt %81 : vector<32x1xf32>
    %83 = vector.broadcast %82 : vector<32x1xf32> to vector<32x32xf32>
    %84 = arith.mulf %79, %83 : vector<32x32xf32>
    %85 = arith.mulf %84, %65 : vector<32x32xf32>
    %86 = arith.addf %85, %66 : vector<32x32xf32>
    %c32_27 = arith.constant 32 : index
    %c0_28 = arith.constant 0 : index
    %87 = vector.load %arg2[%c32_27, %c0_28] : memref<160x96xbf16, #tpu.memory_space<vmem>>, vector<32x64xbf16>
    %88 = arith.truncf %86 : vector<32x32xf32> to vector<32x32xbf16>
    %cst_29 = arith.constant dense<0.000000e+00> : vector<32x64xf32>
    %89 = tpu.matmul %88, %87, %cst_29 {dimension_numbers = #tpu.dot_dimension_numbers<[1], [0], [0], [1], [0, 0, 1, 1], [], []>} : vector<32x32xbf16>, vector<32x64xbf16>, vector<32x64xf32> -> vector<32x64xf32>
    %c192 = arith.constant 192 : index
    %c0_30 = arith.constant 0 : index
    %90 = vector.load %arg3[%c192, %c0_30] : memref<384x96xf32, #tpu.memory_space<vmem>>, vector<32x64xf32>
    %91 = arith.addf %89, %90 : vector<32x64xf32>
    %c1_i32 = arith.constant 1 : i32
    %92 = tpu.dynamic_rotate %91 by %c1_i32 dim 0 : vector<32x64xf32>, i32 -> vector<32x64xf32>
    %c31_i32 = arith.constant 31 : i32
    %93 = tpu.dynamic_rotate %91 by %c31_i32 dim 0 : vector<32x64xf32>, i32 -> vector<32x64xf32>
    %c224 = arith.constant 224 : index
    %c0_31 = arith.constant 0 : index
    %94 = vector.load %arg3[%c224, %c0_31] : memref<384x96xf32, #tpu.memory_space<vmem>>, vector<32x64xf32>
    %95 = arith.mulf %92, %94 : vector<32x64xf32>
    %c256 = arith.constant 256 : index
    %c0_32 = arith.constant 0 : index
    %96 = vector.load %arg3[%c256, %c0_32] : memref<384x96xf32, #tpu.memory_space<vmem>>, vector<32x64xf32>
    %97 = arith.mulf %91, %96 : vector<32x64xf32>
    %98 = arith.addf %95, %97 : vector<32x64xf32>
    %c288 = arith.constant 288 : index
    %c0_33 = arith.constant 0 : index
    %99 = vector.load %arg3[%c288, %c0_33] : memref<384x96xf32, #tpu.memory_space<vmem>>, vector<32x64xf32>
    %100 = arith.mulf %93, %99 : vector<32x64xf32>
    %101 = arith.addf %98, %100 : vector<32x64xf32>
    %c320 = arith.constant 320 : index
    %c0_34 = arith.constant 0 : index
    %102 = vector.load %arg3[%c320, %c0_34] : memref<384x96xf32, #tpu.memory_space<vmem>>, vector<32x64xf32>
    %103 = arith.addf %101, %102 : vector<32x64xf32>
    %cst_35 = arith.constant 5.000000e-01 : f32
    %104 = vector.broadcast %cst_35 : f32 to vector<32x64xf32>
    %105 = arith.mulf %104, %103 : vector<32x64xf32>
    %106 = arith.mulf %103, %103 : vector<32x64xf32>
    %107 = arith.mulf %106, %103 : vector<32x64xf32>
    %cst_36 = arith.constant 4.471500e-02 : f32
    %108 = vector.broadcast %cst_36 : f32 to vector<32x64xf32>
    %109 = arith.mulf %108, %107 : vector<32x64xf32>
    %110 = arith.addf %103, %109 : vector<32x64xf32>
    %cst_37 = arith.constant 0.797884583 : f32
    %111 = vector.broadcast %cst_37 : f32 to vector<32x64xf32>
    %112 = arith.mulf %111, %110 : vector<32x64xf32>
    %113 = math.tanh %112 : vector<32x64xf32>
    %cst_38 = arith.constant 1.000000e+00 : f32
    %114 = vector.broadcast %cst_38 : f32 to vector<32x64xf32>
    %115 = arith.addf %114, %113 : vector<32x64xf32>
    %116 = arith.mulf %105, %115 : vector<32x64xf32>
    %c64_39 = arith.constant 64 : index
    %c0_40 = arith.constant 0 : index
    %117 = vector.load %arg2[%c64_39, %c0_40] : memref<160x96xbf16, #tpu.memory_space<vmem>>, vector<64x32xbf16>
    %118 = arith.truncf %116 : vector<32x64xf32> to vector<32x64xbf16>
    %cst_41 = arith.constant dense<0.000000e+00> : vector<32x32xf32>
    %119 = tpu.matmul %118, %117, %cst_41 {dimension_numbers = #tpu.dot_dimension_numbers<[1], [0], [0], [1], [0, 0, 1, 1], [], []>} : vector<32x64xbf16>, vector<64x32xbf16>, vector<32x32xf32> -> vector<32x32xf32>
    %c352 = arith.constant 352 : index
    %c0_42 = arith.constant 0 : index
    %120 = vector.load %arg3[%c352, %c0_42] : memref<384x96xf32, #tpu.memory_space<vmem>>, vector<32x32xf32>
    %121 = arith.addf %119, %120 : vector<32x32xf32>
    %122 = arith.addf %121, %64 : vector<32x32xf32>
    %c0_43 = arith.constant 0 : index
    %c0_44 = arith.constant 0 : index
    %123 = vector.load %arg4[%c0_43, %c0_44] : memref<32x32xf32, #tpu.memory_space<vmem>>, vector<32x32xf32>
    tpu.vector_store %arg4[%c0_43, %c0_44], %122 {strides = array<i32>} : memref<32x32xf32, #tpu.memory_space<vmem>>, vector<32x32xf32>,
    return
  }
  func.func @transform_0(%arg0: i32) -> (i32, i32) {
    %c0_i32 = arith.constant 0 : i32
    %c0_i32_0 = arith.constant 0 : i32
    %c0_i32_1 = arith.constant 0 : i32
    return %c0_i32, %c0_i32_0 : i32, i32
  }
  func.func @transform_1(%arg0: i32) -> (i32, i32) {
    %c0_i32 = arith.constant 0 : i32
    %c0_i32_0 = arith.constant 0 : i32
    %c0_i32_1 = arith.constant 0 : i32
    return %c0_i32, %c0_i32_0 : i32, i32
  }
  func.func @transform_2(%arg0: i32) -> (i32, i32) {
    %c0_i32 = arith.constant 0 : i32
    %c0_i32_0 = arith.constant 0 : i32
    %c0_i32_1 = arith.constant 0 : i32
    return %c0_i32, %c0_i32_0 : i32, i32
  }
  func.func @transform_3(%arg0: i32) -> (i32, i32) {
    %c0_i32 = arith.constant 0 : i32
    %c0_i32_0 = arith.constant 0 : i32
    %c0_i32_1 = arith.constant 0 : i32
    return %c0_i32, %c0_i32_0 : i32, i32
  }
}

</mosaic_0001>

<llo_original>
// kernel: tpu_custom_call.1
$region0: #{tpu_custom_call.1}
  #allocation0 [shape = 'u32[]', space=smem, size = 0x4, offset = 0x4, fixed_abs, tag = 'smem constant byte address 0x4 - core index']
  #allocation1 [shape = 'u32[72,128]{1,0:T(1,128)}', space=vmem, size = 0x9000, scoped, tag = 'internal scratch']
  %s0 = inlined_call_operand.vmem [shape: f32[32,32], index: 0, kind: input, shape index: {}]
  %s1 = inlined_call_operand.vmem [shape: bf16[160,96], index: 1, kind: input, shape index: {}]
  %s2 = inlined_call_operand.vmem [shape: f32[384,96], index: 2, kind: input, shape index: {}]
  %s3 = inlined_call_operand.hbm [shape: f32[32,32], index: 3, kind: output, shape index: {}]
  %s4 = sld [smem:[#allocation0]]
  $region22: #{tpu_custom_call.1} parent=0
    _
  %s6 = ssub.s32 1, %s4
  %s7 = scalar_select 0, %s6, %s4
  $region1: #{tpu_custom_call.1} parent=0
    #allocation2 [shape = 'u8[16384]{0}', space=vmem, size = 0x4000, scoped, tag = 'output window, operand 0, single buffered']
    #allocation3 [shape = 's32[1]{0}', space=sflag, size = 0x4, scoped, tag = 'scoped memory for tpu_custom_call.1']
    %8 = vsyncpa [#allocation3], 0
    // Predicated region
    $region2: #{tpu_custom_call.1} parent=1 // pred_check
      _
    $region3: #{tpu_custom_call.1} parent=1 // pred_check_branch
      %10 = sbr.rel (0) target = $region5
    $region4: #{tpu_custom_call.1} parent=1 // pred_region
      _
    $region5: #{tpu_custom_call.1} parent=1 // pred_fallthru
      _
    // Predicated region
    $region6: #{tpu_custom_call.1} parent=1 // pred_check
      _
    $region7: #{tpu_custom_call.1} parent=1 // pred_check_branch
      %12 = sbr.rel (0) target = $region9
    $region8: #{tpu_custom_call.1} parent=1 // pred_region
      _
    $region9: #{tpu_custom_call.1} parent=1 // pred_fallthru
      _
    // Predicated region
    $region10: #{tpu_custom_call.1} parent=1 // pred_check
      _
    $region11: #{tpu_custom_call.1} parent=1 // pred_check_branch
      %14 = sbr.rel (0) target = $region13
    $region12: #{tpu_custom_call.1} parent=1 // pred_region
      _
    $region13: #{tpu_custom_call.1} parent=1 // pred_fallthru
      _
    %v16 = vld [vmem:[%s0] sm:$0xff]
    %v17 = vld [vmem:[%s0 + $0x8] sm:$0xff]
    %v18 = vld [vmem:[%s0 + $0x10] sm:$0xff]
    %v19 = vld [vmem:[%s0 + $0x18] sm:$0xff]
    %v20 = vld [vmem:[%s2] sm:$0xff]
    %v21 = vld [vmem:[%s2 + $0x8] sm:$0xff]
    %v22 = vld [vmem:[%s2 + $0x10] sm:$0xff]
    %v23 = vld [vmem:[%s2 + $0x18] sm:$0xff]
    %v24 = vld [vmem:[%s2 + $0x20] sm:$0xff]
    %v25 = vld [vmem:[%s2 + $0x28] sm:$0xff]
    %v26 = vld [vmem:[%s2 + $0x30] sm:$0xff]
    %v27 = vld [vmem:[%s2 + $0x38] sm:$0xff]
    %vm28 = vcmask 261120
    %v29 = vsel %vm28, %v16, 0.0
    %30 = vadd.xlane.f32.xlu0 %v29
    %v31 = vpop.xlane.xlu0 %30
    %v32 = vsel %vm28, %v17, 0.0
    %33 = vadd.xlane.f32.xlu0 %v32
    %v34 = vpop.xlane.xlu0 %33
    %v35 = vsel %vm28, %v18, 0.0
    %36 = vadd.xlane.f32.xlu0 %v35
    %v37 = vpop.xlane.xlu0 %36
    %v38 = vsel %vm28, %v19, 0.0
    %39 = vadd.xlane.f32.xlu0 %v38
    %v40 = vpop.xlane.xlu0 %39
    %v41 = vrcp.pop 32.0
    %v42 = vmul.f32 32.0, %v41
    %v43 = vsub.f32 1.0, %v42
    %v44 = vmul.f32 %v41, %v43
    %v45 = vadd.f32 %v41, %v44
    %vm46 = vweird.f32 %v41
    %v47 = vsel %vm46, %v41, %v45
    %v48 = vmul.f32 %v31, %v47
    %v49 = vmul.f32 %v34, %v47
    %v50 = vmul.f32 %v37, %v47
    %v51 = vmul.f32 %v40, %v47
    %v52 = vsub.f32 %v16, %v48
    %v53 = vsub.f32 %v17, %v49
    %v54 = vsub.f32 %v18, %v50
    %v55 = vsub.f32 %v19, %v51
    %v56 = vmul.f32 %v52, %v52
    %v57 = vmul.f32 %v53, %v53
    %v58 = vmul.f32 %v54, %v54
    %v59 = vmul.f32 %v55, %v55
    %v60 = vsel %vm28, %v56, 0.0
    %61 = vadd.xlane.f32.xlu0 %v60
    %v62 = vpop.xlane.xlu0 %61
    %v63 = vsel %vm28, %v57, 0.0
    %64 = vadd.xlane.f32.xlu0 %v63
    %v65 = vpop.xlane.xlu0 %64
    %v66 = vsel %vm28, %v58, 0.0
    %67 = vadd.xlane.f32.xlu0 %v66
    %v68 = vpop.xlane.xlu0 %67
    %v69 = vsel %vm28, %v59, 0.0
    %70 = vadd.xlane.f32.xlu0 %v69
    %v71 = vpop.xlane.xlu0 %70
    %v72 = vmul.f32 %v62, %v47
    %v73 = vmul.f32 %v65, %v47
    %v74 = vmul.f32 %v68, %v47
    %v75 = vmul.f32 %v71, %v47
    %v76 = vadd.f32 %v72, 1e-05
    %v77 = vadd.f32 %v73, 1e-05
    %v78 = vadd.f32 %v74, 1e-05
    %v79 = vadd.f32 %v75, 1e-05
    %v80 = vrsqrt.pop %v76
    %v81 = vmul.f32 %v80, %v76
    %v82 = vmul.f32 %v81, %v80
    %v83 = vmul.f32 0.5, %v82
    %v84 = vsub.f32 1.5, %v83
    %v85 = vmul.f32 %v80, %v84
    %vm86 = vweird.f32 %v76
    %vm87 = vweird.f32 %v80
    %vm88 = vmor %vm86, %vm87
    %v89 = vsel %vm88, %v80, %v85
    %v90 = vrsqrt.pop %v77
    %v91 = vmul.f32 %v90, %v77
    %v92 = vmul.f32 %v91, %v90
    %v93 = vmul.f32 0.5, %v92
    %v94 = vsub.f32 1.5, %v93
    %v95 = vmul.f32 %v90, %v94
    %vm96 = vweird.f32 %v77
    %vm97 = vweird.f32 %v90
    %vm98 = vmor %vm96, %vm97
    %v99 = vsel %vm98, %v90, %v95
    %v100 = vrsqrt.pop %v78
    %v101 = vmul.f32 %v100, %v78
    %v102 = vmul.f32 %v101, %v100
    %v103 = vmul.f32 0.5, %v102
    %v104 = vsub.f32 1.5, %v103
    %v105 = vmul.f32 %v100, %v104
    %vm106 = vweird.f32 %v78
    %vm107 = vweird.f32 %v100
    %vm108 = vmor %vm106, %vm107
    %v109 = vsel %vm108, %v100, %v105
    %v110 = vrsqrt.pop %v79
    %v111 = vmul.f32 %v110, %v79
    %v112 = vmul.f32 %v111, %v110
    %v113 = vmul.f32 0.5, %v112
    %v114 = vsub.f32 1.5, %v113
    %v115 = vmul.f32 %v110, %v114
    %vm116 = vweird.f32 %v79
    %vm117 = vweird.f32 %v110
    %vm118 = vmor %vm116, %vm117
    %v119 = vsel %vm118, %v110, %v115
    %v120 = vmul.f32 %v52, %v89
    %v121 = vmul.f32 %v53, %v99
    %v122 = vmul.f32 %v54, %v109
    %v123 = vmul.f32 %v55, %v119
    %v124 = vmul.f32 %v120, %v20
    %v125 = vmul.f32 %v121, %v21
    %v126 = vmul.f32 %v122, %v22
    %v127 = vmul.f32 %v123, %v23
    %v128 = vadd.f32 %v124, %v24
    %v129 = vadd.f32 %v125, %v25
    %v130 = vadd.f32 %v126, %v26
    %v131 = vadd.f32 %v127, %v27
    %v132 = vld [vmem:[%s1] sm:$0xf]
    %v133 = vld [vmem:[%s1 + $0x4] sm:$0xf]
    %v134 = vld [vmem:[%s1 + $0x8] sm:$0xf]
    %v135 = vld [vmem:[%s1 + $0xc] sm:$0xf]
    %v136 = vpack.c.bf16 %v129, %v128
    %v137 = vpack.c.bf16 %v131, %v130
    %v138 = vld [vmem:[%s2 + $0x80] sm:$0xff]
    %v139 = vld [vmem:[%s2 + $0x88] sm:$0xff]
    %v140 = vld [vmem:[%s2 + $0x90] sm:$0xff]
    %v141 = vld [vmem:[%s2 + $0x98] sm:$0xff]
    %v146 = vunpack.c.l.b16 %v132
    %v147 = vunpack.c.l.b16 %v133
    %v148 = vunpack.c.l.b16 %v134
    %v149 = vunpack.c.l.b16 %v135
    %v150 = vpack.c.b16 %v147, %v146
    %v151 = vpack.c.b16 %v149, %v148
    %v155 = vsel %vm28, %v136, 0
    %v158 = vsel %vm28, %v137, 0
    %160 = vmatpush.bf16.msra.mxu0 0
    %161 = vmatpush.bf16.msra.mxu0 0
    %162 = vmatpush.bf16.msra.mxu0 0
    %163 = vmatpush.bf16.msra.mxu0 0
    %164 = vmatpush.bf16.msra.mxu0 0
    %165 = vmatpush.bf16.msra.mxu0 0
    %166 = vmatpush.bf16.msra.mxu0 %v151
    %167 = vmatpush.bf16.msra.mxu0 %v150
    %168 = vmatmul.bf16.gmra.mxu0 %v155
    %v169 = vpop.f32.mrf.mxu0
    %v170 = vadd.f32 %v138, %v169
    %v171 = vpop.f32.mrf.mxu0
    %v172 = vadd.f32 %v139, %v171
    %173 = vmatmul.bf16.gmra.mxu0 %v158
    %v174 = vpop.f32.mrf.mxu0
    %v175 = vadd.f32 %v140, %v174
    %v176 = vpop.f32.mrf.mxu0
    %v177 = vadd.f32 %v141, %v176
    %178 = vdwg.mxu0
    %183 = vrot.lane.b32.xlu0 %v170, 80
    %v184 = vpop.permute.xlu0 %183
    %185 = vrot.lane.b32.xlu0 %v172, 80
    %v186 = vpop.permute.xlu0 %185
    %187 = vrot.lane.b32.xlu0 %v175, 80
    %v188 = vpop.permute.xlu0 %187
    %189 = vrot.lane.b32.xlu0 %v177, 80
    %v190 = vpop.permute.xlu0 %189
    %v195 = vpack.c.bf16 %v170, %v170
    %v196 = vpack.c.bf16 %v172, %v172
    %v197 = vpack.c.bf16 %v175, %v175
    %v198 = vpack.c.bf16 %v177, %v177
    %v199 = vpack.c.bf16 %v184, %v184
    %v200 = vpack.c.bf16 %v186, %v186
    %v201 = vpack.c.bf16 %v188, %v188
    %v202 = vpack.c.bf16 %v190, %v190
    %v205 = vunpack.c.l.b16 %v195
    %v206 = vunpack.c.l.b16 %v196
    %v207 = vpack.c.b16 %v206, %v205
    %208 = vrot.lane.b32.xlu0 %v207, 112
    %v209 = vpop.permute.xlu0 %208
    %vm210 = vcmask 130048
    %v212 = vsel %vm210, %v207, 0
    %v215 = vsel %vm210, %v209, 0
    %217 = vmatpush.bf16.xpose.msra.mxu0 0
    %218 = vmatpush.bf16.xpose.msra.mxu0 0
    %219 = vmatpush.bf16.xpose.msra.mxu0 0
    %220 = vmatpush.bf16.xpose.msra.mxu0 0
    %221 = vmatpush.bf16.xpose.msra.mxu0 0
    %222 = vmatpush.bf16.xpose.msra.mxu0 0
    %223 = vmatpush.bf16.xpose.msra.mxu0 0
    %224 = vmatpush.bf16.xpose.msra.mxu0 %v215
    %225 = vmatmul.bf16.gmra.mxu0 %v212
    %v226 = vpop.f32.mrf.mxu0
    %v227 = vadd.f32 0.0, %v226
    %v228 = vpop.f32.mrf.mxu0
    %v229 = vadd.f32 0.0, %v228
    %230 = vdwg.mxu0
    %v233 = vunpack.c.l.b16 %v197
    %v234 = vunpack.c.l.b16 %v198
    %v235 = vpack.c.b16 %v234, %v233
    %236 = vrot.lane.b32.xlu0 %v235, 112
    %v237 = vpop.permute.xlu0 %236
    %v239 = vsel %vm210, %v235, 0
    %v242 = vsel %vm210, %v237, 0
    %244 = vmatpush.bf16.xpose.msra.mxu0 0
    %245 = vmatpush.bf16.xpose.msra.mxu0 0
    %246 = vmatpush.bf16.xpose.msra.mxu0 0
    %247 = vmatpush.bf16.xpose.msra.mxu0 0
    %248 = vmatpush.bf16.xpose.msra.mxu0 0
    %249 = vmatpush.bf16.xpose.msra.mxu0 0
    %250 = vmatpush.bf16.xpose.msra.mxu0 0
    %251 = vmatpush.bf16.xpose.msra.mxu0 %v242
    %252 = vmatmul.bf16.gmra.mxu0 %v239
    %v253 = vpop.f32.mrf.mxu0
    %v254 = vadd.f32 0.0, %v253
    %v255 = vpop.f32.mrf.mxu0
    %v256 = vadd.f32 0.0, %v255
    %257 = vdwg.mxu0
    %v260 = vunpack.c.l.b16 %v199
    %v261 = vunpack.c.l.b16 %v200
    %v262 = vpack.c.b16 %v261, %v260
    %263 = vrot.lane.b32.xlu0 %v262, 112
    %v264 = vpop.permute.xlu0 %263
    %v266 = vsel %vm210, %v262, 0
    %v269 = vsel %vm210, %v264, 0
    %271 = vmatpush.bf16.xpose.msra.mxu0 0
    %272 = vmatpush.bf16.xpose.msra.mxu0 0
    %273 = vmatpush.bf16.xpose.msra.mxu0 0
    %274 = vmatpush.bf16.xpose.msra.mxu0 0
    %275 = vmatpush.bf16.xpose.msra.mxu0 0
    %276 = vmatpush.bf16.xpose.msra.mxu0 0
    %277 = vmatpush.bf16.xpose.msra.mxu0 0
    %278 = vmatpush.bf16.xpose.msra.mxu0 %v269
    %279 = vmatmul.bf16.gmra.mxu0 %v266
    %v280 = vpop.f32.mrf.mxu0
    %v281 = vadd.f32 0.0, %v280
    %v282 = vpop.f32.mrf.mxu0
    %v283 = vadd.f32 0.0, %v282
    %284 = vdwg.mxu0
    %v287 = vunpack.c.l.b16 %v201
    %v288 = vunpack.c.l.b16 %v202
    %v289 = vpack.c.b16 %v288, %v287
    %290 = vrot.lane.b32.xlu0 %v289, 112
    %v291 = vpop.permute.xlu0 %290
    %v293 = vsel %vm210, %v289, 0
    %v296 = vsel %vm210, %v291, 0
    %298 = vmatpush.bf16.xpose.msra.mxu0 0
    %299 = vmatpush.bf16.xpose.msra.mxu0 0
    %300 = vmatpush.bf16.xpose.msra.mxu0 0
    %301 = vmatpush.bf16.xpose.msra.mxu0 0
    %302 = vmatpush.bf16.xpose.msra.mxu0 0
    %303 = vmatpush.bf16.xpose.msra.mxu0 0
    %304 = vmatpush.bf16.xpose.msra.mxu0 0
    %305 = vmatpush.bf16.xpose.msra.mxu0 %v296
    %306 = vmatmul.bf16.gmra.mxu0 %v293
    %v307 = vpop.f32.mrf.mxu0
    %v308 = vadd.f32 0.0, %v307
    %v309 = vpop.f32.mrf.mxu0
    %v310 = vadd.f32 0.0, %v309
    %311 = vdwg.mxu0
    %v312 = vsel %vm210, %v227, -inf
    %313 = vmax.xlane.f32.xlu0 %v312
    %v314 = vpop.xlane.xlu0 %313
    %v315 = vsel %vm210, %v229, -inf
    %316 = vmax.xlane.f32.xlu0 %v315
    %v317 = vpop.xlane.xlu0 %316
    %v318 = vsel %vm210, %v254, -inf
    %319 = vmax.xlane.f32.xlu0 %v318
    %v320 = vpop.xlane.xlu0 %319
    %v321 = vsel %vm210, %v256, -inf
    %322 = vmax.xlane.f32.xlu0 %v321
    %v323 = vpop.xlane.xlu0 %322
    %v324 = vsel %vm210, %v281, -inf
    %325 = vmax.xlane.f32.xlu0 %v324
    %v326 = vpop.xlane.xlu0 %325
    %v327 = vsel %vm210, %v283, -inf
    %328 = vmax.xlane.f32.xlu0 %v327
    %v329 = vpop.xlane.xlu0 %328
    %v330 = vsel %vm210, %v308, -inf
    %331 = vmax.xlane.f32.xlu0 %v330
    %v332 = vpop.xlane.xlu0 %331
    %v333 = vsel %vm210, %v310, -inf
    %334 = vmax.xlane.f32.xlu0 %v333
    %v335 = vpop.xlane.xlu0 %334
    %v336 = vsub.f32 %v227, %v314
    %v337 = vsub.f32 %v229, %v317
    %v338 = vsub.f32 %v254, %v320
    %v339 = vsub.f32 %v256, %v323
    %v340 = vsub.f32 %v281, %v326
    %v341 = vsub.f32 %v283, %v329
    %v342 = vsub.f32 %v308, %v332
    %v343 = vsub.f32 %v310, %v335
    %v344 = vmul.f32 %v336, 1.442695
    %v345 = vpow.pop %v344
    %v346 = vmul.f32 %v337, 1.442695
    %v347 = vpow.pop %v346
    %v348 = vmul.f32 %v338, 1.442695
    %v349 = vpow.pop %v348
    %v350 = vmul.f32 %v339, 1.442695
    %v351 = vpow.pop %v350
    %v352 = vmul.f32 %v340, 1.442695
    %v353 = vpow.pop %v352
    %v354 = vmul.f32 %v341, 1.442695
    %v355 = vpow.pop %v354
    %v356 = vmul.f32 %v342, 1.442695
    %v357 = vpow.pop %v356
    %v358 = vmul.f32 %v343, 1.442695
    %v359 = vpow.pop %v358
    %v360 = vsel %vm210, %v345, 0.0
    %361 = vadd.xlane.f32.xlu0 %v360
    %v362 = vpop.xlane.xlu0 %361
    %v363 = vsel %vm210, %v347, 0.0
    %364 = vadd.xlane.f32.xlu0 %v363
    %v365 = vpop.xlane.xlu0 %364
    %v366 = vsel %vm210, %v349, 0.0
    %367 = vadd.xlane.f32.xlu0 %v366
    %v368 = vpop.xlane.xlu0 %367
    %v369 = vsel %vm210, %v351, 0.0
    %370 = vadd.xlane.f32.xlu0 %v369
    %v371 = vpop.xlane.xlu0 %370
    %v372 = vsel %vm210, %v353, 0.0
    %373 = vadd.xlane.f32.xlu0 %v372
    %v374 = vpop.xlane.xlu0 %373
    %v375 = vsel %vm210, %v355, 0.0
    %376 = vadd.xlane.f32.xlu0 %v375
    %v377 = vpop.xlane.xlu0 %376
    %v378 = vsel %vm210, %v357, 0.0
    %379 = vadd.xlane.f32.xlu0 %v378
    %v380 = vpop.xlane.xlu0 %379
    %v381 = vsel %vm210, %v359, 0.0
    %382 = vadd.xlane.f32.xlu0 %v381
    %v383 = vpop.xlane.xlu0 %382
    %v384 = vrcp.pop %v362
    %v385 = vrcp.pop %v365
    %v386 = vrcp.pop %v368
    %v387 = vrcp.pop %v371
    %v388 = vrcp.pop %v374
    %v389 = vrcp.pop %v377
    %v390 = vrcp.pop %v380
    %v391 = vrcp.pop %v383
    %v392 = vmul.f32 %v345, %v384
    %v393 = vmul.f32 %v347, %v385
    %v394 = vmul.f32 %v349, %v386
    %v395 = vmul.f32 %v351, %v387
    %v396 = vmul.f32 %v353, %v388
    %v397 = vmul.f32 %v355, %v389
    %v398 = vmul.f32 %v357, %v390
    %v399 = vmul.f32 %v359, %v391
    %v400 = vpack.c.bf16 %v392, %v392
    %v401 = vpack.c.bf16 %v393, %v393
    %v402 = vpack.c.bf16 %v394, %v394
    %v403 = vpack.c.bf16 %v395, %v395
    %v404 = vpack.c.bf16 %v396, %v396
    %v405 = vpack.c.bf16 %v397, %v397
    %v406 = vpack.c.bf16 %v398, %v398
    %v407 = vpack.c.bf16 %v399, %v399
    %v410 = vunpack.c.l.b16 %v400
    %v411 = vunpack.c.l.b16 %v401
    %v412 = vpack.c.b16 %v411, %v410
    %413 = vrot.lane.b32.xlu0 %v207, 96
    %v414 = vpop.permute.xlu0 %413
    %v417 = vsel %vm210, %v412, 0
    %419 = vmatpush.bf16.msra.mxu0 0
    %420 = vmatpush.bf16.msra.mxu0 0
    %421 = vmatpush.bf16.msra.mxu0 0
    %422 = vmatpush.bf16.msra.mxu0 0
    %423 = vmatpush.bf16.msra.mxu0 0
    %424 = vmatpush.bf16.msra.mxu0 0
    %425 = vmatpush.bf16.msra.mxu0 0
    %426 = vmatpush.bf16.msra.mxu0 %v414
    %427 = vmatmul.bf16.gmra.mxu0 %v417
    %v428 = vpop.f32.mrf.mxu0
    %v429 = vadd.f32 0.0, %v428
    %v430 = vpop.f32.mrf.mxu0
    %v431 = vadd.f32 0.0, %v430
    %432 = vdwg.mxu0
    %v435 = vunpack.c.l.b16 %v402
    %v436 = vunpack.c.l.b16 %v403
    %v437 = vpack.c.b16 %v436, %v435
    %438 = vrot.lane.b32.xlu0 %v235, 96
    %v439 = vpop.permute.xlu0 %438
    %v442 = vsel %vm210, %v437, 0
    %444 = vmatpush.bf16.msra.mxu0 0
    %445 = vmatpush.bf16.msra.mxu0 0
    %446 = vmatpush.bf16.msra.mxu0 0
    %447 = vmatpush.bf16.msra.mxu0 0
    %448 = vmatpush.bf16.msra.mxu0 0
    %449 = vmatpush.bf16.msra.mxu0 0
    %450 = vmatpush.bf16.msra.mxu0 0
    %451 = vmatpush.bf16.msra.mxu0 %v439
    %452 = vmatmul.bf16.gmra.mxu0 %v442
    %v453 = vpop.f32.mrf.mxu0
    %v454 = vadd.f32 0.0, %v453
    %v455 = vpop.f32.mrf.mxu0
    %v456 = vadd.f32 0.0, %v455
    %457 = vdwg.mxu0
    %v460 = vunpack.c.l.b16 %v404
    %v461 = vunpack.c.l.b16 %v405
    %v462 = vpack.c.b16 %v461, %v460
    %463 = vrot.lane.b32.xlu0 %v262, 96
    %v464 = vpop.permute.xlu0 %463
    %v467 = vsel %vm210, %v462, 0
    %469 = vmatpush.bf16.msra.mxu0 0
    %470 = vmatpush.bf16.msra.mxu0 0
    %471 = vmatpush.bf16.msra.mxu0 0
    %472 = vmatpush.bf16.msra.mxu0 0
    %473 = vmatpush.bf16.msra.mxu0 0
    %474 = vmatpush.bf16.msra.mxu0 0
    %475 = vmatpush.bf16.msra.mxu0 0
    %476 = vmatpush.bf16.msra.mxu0 %v464
    %477 = vmatmul.bf16.gmra.mxu0 %v467
    %v478 = vpop.f32.mrf.mxu0
    %v479 = vadd.f32 0.0, %v478
    %v480 = vpop.f32.mrf.mxu0
    %v481 = vadd.f32 0.0, %v480
    %482 = vdwg.mxu0
    %v485 = vunpack.c.l.b16 %v406
    %v486 = vunpack.c.l.b16 %v407
    %v487 = vpack.c.b16 %v486, %v485
    %488 = vrot.lane.b32.xlu0 %v289, 96
    %v489 = vpop.permute.xlu0 %488
    %v492 = vsel %vm210, %v487, 0
    %494 = vmatpush.bf16.msra.mxu0 0
    %495 = vmatpush.bf16.msra.mxu0 0
    %496 = vmatpush.bf16.msra.mxu0 0
    %497 = vmatpush.bf16.msra.mxu0 0
    %498 = vmatpush.bf16.msra.mxu0 0
    %499 = vmatpush.bf16.msra.mxu0 0
    %500 = vmatpush.bf16.msra.mxu0 0
    %501 = vmatpush.bf16.msra.mxu0 %v489
    %502 = vmatmul.bf16.gmra.mxu0 %v492
    %v503 = vpop.f32.mrf.mxu0
    %v504 = vadd.f32 0.0, %v503
    %v505 = vpop.f32.mrf.mxu0
    %v506 = vadd.f32 0.0, %v505
    %507 = vdwg.mxu0
    %v508 = vld [vmem:[%s1 + $0x40] sm:$0xf]
    %v509 = vld [vmem:[%s1 + $0x44] sm:$0xf]
    %v510 = vld [vmem:[%s1 + $0x48] sm:$0xf]
    %v511 = vld [vmem:[%s1 + $0x4c] sm:$0xf]
    %v512 = vpack.c.bf16 %v429, %v429
    %v513 = vpack.c.bf16 %v431, %v431
    %v514 = vpack.c.bf16 %v454, %v454
    %v515 = vpack.c.bf16 %v456, %v456
    %v516 = vpack.c.bf16 %v479, %v479
    %v517 = vpack.c.bf16 %v481, %v481
    %v518 = vpack.c.bf16 %v504, %v504
    %v519 = vpack.c.bf16 %v506, %v506
    %v524 = vunpack.c.l.b16 %v512
    %v525 = vunpack.c.l.b16 %v513
    %v526 = vunpack.c.l.b16 %v514
    %v527 = vunpack.c.l.b16 %v515
    %v528 = vpack.c.b16 %v525, %v524
    %v529 = vpack.c.b16 %v527, %v526
    %v532 = vunpack.c.l.b16 %v508
    %v533 = vunpack.c.l.b16 %v509
    %v534 = vpack.c.b16 %v533, %v532
    %v537 = vsel %vm210, %v528, 0
    %v540 = vsel %vm210, %v529, 0
    %542 = vmatpush.bf16.msra.mxu0 0
    %543 = vmatpush.bf16.msra.mxu0 0
    %544 = vmatpush.bf16.msra.mxu0 0
    %545 = vmatpush.bf16.msra.mxu0 0
    %546 = vmatpush.bf16.msra.mxu0 0
    %547 = vmatpush.bf16.msra.mxu0 0
    %548 = vmatpush.bf16.msra.mxu0 0
    %549 = vmatpush.bf16.msra.mxu0 %v534
    %550 = vmatmul.bf16.gmra.mxu0 %v537
    %v551 = vpop.f32.mrf.mxu0
    %v552 = vadd.f32 0.0, %v551
    %v553 = vpop.f32.mrf.mxu0
    %v554 = vadd.f32 0.0, %v553
    %555 = vmatmul.bf16.gmra.mxu0 %v540
    %v556 = vpop.f32.mrf.mxu0
    %v557 = vadd.f32 0.0, %v556
    %v558 = vpop.f32.mrf.mxu0
    %v559 = vadd.f32 0.0, %v558
    %560 = vdwg.mxu0
    %v565 = vunpack.c.l.b16 %v516
    %v566 = vunpack.c.l.b16 %v517
    %v567 = vunpack.c.l.b16 %v518
    %v568 = vunpack.c.l.b16 %v519
    %v569 = vpack.c.b16 %v566, %v565
    %v570 = vpack.c.b16 %v568, %v567
    %v573 = vunpack.c.l.b16 %v510
    %v574 = vunpack.c.l.b16 %v511
    %v575 = vpack.c.b16 %v574, %v573
    %v578 = vsel %vm210, %v569, 0
    %v581 = vsel %vm210, %v570, 0
    %583 = vmatpush.bf16.msra.mxu0 0
    %584 = vmatpush.bf16.msra.mxu0 0
    %585 = vmatpush.bf16.msra.mxu0 0
    %586 = vmatpush.bf16.msra.mxu0 0
    %587 = vmatpush.bf16.msra.mxu0 0
    %588 = vmatpush.bf16.msra.mxu0 0
    %589 = vmatpush.bf16.msra.mxu0 0
    %590 = vmatpush.bf16.msra.mxu0 %v575
    %591 = vmatmul.bf16.gmra.mxu0 %v578
    %v592 = vpop.f32.mrf.mxu0
    %v593 = vadd.f32 0.0, %v592
    %v594 = vpop.f32.mrf.mxu0
    %v595 = vadd.f32 0.0, %v594
    %596 = vmatmul.bf16.gmra.mxu0 %v581
    %v597 = vpop.f32.mrf.mxu0
    %v598 = vadd.f32 0.0, %v597
    %v599 = vpop.f32.mrf.mxu0
    %v600 = vadd.f32 0.0, %v599
    %601 = vdwg.mxu0
    %v602 = vadd.f32 %v552, %v593
    %v603 = vadd.f32 %v554, %v595
    %v604 = vadd.f32 %v557, %v598
    %v605 = vadd.f32 %v559, %v600
    %v606 = vld [vmem:[%s2 + $0xa0] sm:$0xff]
    %v607 = vld [vmem:[%s2 + $0xa8] sm:$0xff]
    %v608 = vld [vmem:[%s2 + $0xb0] sm:$0xff]
    %v609 = vld [vmem:[%s2 + $0xb8] sm:$0xff]
    %v610 = vadd.f32 %v602, %v606
    %v611 = vadd.f32 %v603, %v607
    %v612 = vadd.f32 %v604, %v608
    %v613 = vadd.f32 %v605, %v609
    %v614 = vadd.f32 %v610, %v16
    %v615 = vadd.f32 %v611, %v17
    %v616 = vadd.f32 %v612, %v18
    %v617 = vadd.f32 %v613, %v19
    %v618 = vld [vmem:[%s2 + $0x40] sm:$0xff]
    %v619 = vld [vmem:[%s2 + $0x48] sm:$0xff]
    %v620 = vld [vmem:[%s2 + $0x50] sm:$0xff]
    %v621 = vld [vmem:[%s2 + $0x58] sm:$0xff]
    %v622 = vld [vmem:[%s2 + $0x60] sm:$0xff]
    %v623 = vld [vmem:[%s2 + $0x68] sm:$0xff]
    %v624 = vld [vmem:[%s2 + $0x70] sm:$0xff]
    %v625 = vld [vmem:[%s2 + $0x78] sm:$0xff]
    %v626 = vsel %vm28, %v614, 0.0
    %627 = vadd.xlane.f32.xlu0 %v626
    %v628 = vpop.xlane.xlu0 %627
    %v629 = vsel %vm28, %v615, 0.0
    %630 = vadd.xlane.f32.xlu0 %v629
    %v631 = vpop.xlane.xlu0 %630
    %v632 = vsel %vm28, %v616, 0.0
    %633 = vadd.xlane.f32.xlu0 %v632
    %v634 = vpop.xlane.xlu0 %633
    %v635 = vsel %vm28, %v617, 0.0
    %636 = vadd.xlane.f32.xlu0 %v635
    %v637 = vpop.xlane.xlu0 %636
    %v638 = vmul.f32 %v628, %v47
    %v639 = vmul.f32 %v631, %v47
    %v640 = vmul.f32 %v634, %v47
    %v641 = vmul.f32 %v637, %v47
    %v642 = vsub.f32 %v614, %v638
    %v643 = vsub.f32 %v615, %v639
    %v644 = vsub.f32 %v616, %v640
    %v645 = vsub.f32 %v617, %v641
    %v646 = vmul.f32 %v642, %v642
    %v647 = vmul.f32 %v643, %v643
    %v648 = vmul.f32 %v644, %v644
    %v649 = vmul.f32 %v645, %v645
    %v650 = vsel %vm28, %v646, 0.0
    %651 = vadd.xlane.f32.xlu0 %v650
    %v652 = vpop.xlane.xlu0 %651
    %v653 = vsel %vm28, %v647, 0.0
    %654 = vadd.xlane.f32.xlu0 %v653
    %v655 = vpop.xlane.xlu0 %654
    %v656 = vsel %vm28, %v648, 0.0
    %657 = vadd.xlane.f32.xlu0 %v656
    %v658 = vpop.xlane.xlu0 %657
    %v659 = vsel %vm28, %v649, 0.0
    %660 = vadd.xlane.f32.xlu0 %v659
    %v661 = vpop.xlane.xlu0 %660
    %v662 = vmul.f32 %v652, %v47
    %v663 = vmul.f32 %v655, %v47
    %v664 = vmul.f32 %v658, %v47
    %v665 = vmul.f32 %v661, %v47
    %v666 = vadd.f32 %v662, 1e-05
    %v667 = vadd.f32 %v663, 1e-05
    %v668 = vadd.f32 %v664, 1e-05
    %v669 = vadd.f32 %v665, 1e-05
    %v670 = vrsqrt.pop %v666
    %v671 = vmul.f32 %v670, %v666
    %v672 = vmul.f32 %v671, %v670
    %v673 = vmul.f32 0.5, %v672
    %v674 = vsub.f32 1.5, %v673
    %v675 = vmul.f32 %v670, %v674
    %vm676 = vweird.f32 %v666
    %vm677 = vweird.f32 %v670
    %vm678 = vmor %vm676, %vm677
    %v679 = vsel %vm678, %v670, %v675
    %v680 = vrsqrt.pop %v667
    %v681 = vmul.f32 %v680, %v667
    %v682 = vmul.f32 %v681, %v680
    %v683 = vmul.f32 0.5, %v682
    %v684 = vsub.f32 1.5, %v683
    %v685 = vmul.f32 %v680, %v684
    %vm686 = vweird.f32 %v667
    %vm687 = vweird.f32 %v680
    %vm688 = vmor %vm686, %vm687
    %v689 = vsel %vm688, %v680, %v685
    %v690 = vrsqrt.pop %v668
    %v691 = vmul.f32 %v690, %v668
    %v692 = vmul.f32 %v691, %v690
    %v693 = vmul.f32 0.5, %v692
    %v694 = vsub.f32 1.5, %v693
    %v695 = vmul.f32 %v690, %v694
    %vm696 = vweird.f32 %v668
    %vm697 = vweird.f32 %v690
    %vm698 = vmor %vm696, %vm697
    %v699 = vsel %vm698, %v690, %v695
    %v700 = vrsqrt.pop %v669
    %v701 = vmul.f32 %v700, %v669
    %v702 = vmul.f32 %v701, %v700
    %v703 = vmul.f32 0.5, %v702
    %v704 = vsub.f32 1.5, %v703
    %v705 = vmul.f32 %v700, %v704
    %vm706 = vweird.f32 %v669
    %vm707 = vweird.f32 %v700
    %vm708 = vmor %vm706, %vm707
    %v709 = vsel %vm708, %v700, %v705
    %v710 = vmul.f32 %v642, %v679
    %v711 = vmul.f32 %v643, %v689
    %v712 = vmul.f32 %v644, %v699
    %v713 = vmul.f32 %v645, %v709
    %v714 = vmul.f32 %v710, %v618
    %v715 = vmul.f32 %v711, %v619
    %v716 = vmul.f32 %v712, %v620
    %v717 = vmul.f32 %v713, %v621
    %v718 = vadd.f32 %v714, %v622
    %v719 = vadd.f32 %v715, %v623
    %v720 = vadd.f32 %v716, %v624
    %v721 = vadd.f32 %v717, %v625
    %v722 = vld [vmem:[%s1 + $0x10] sm:$0xf]
    %v723 = vld [vmem:[%s1 + $0x14] sm:$0xf]
    %v724 = vld [vmem:[%s1 + $0x18] sm:$0xf]
    %v725 = vld [vmem:[%s1 + $0x1c] sm:$0xf]
    %v726 = vpack.c.bf16 %v719, %v718
    %v727 = vpack.c.bf16 %v721, %v720
    %v728 = vld [vmem:[%s2 + $0xc0] sm:$0xff]
    %v729 = vld [vmem:[%s2 + $0xc8] sm:$0xff]
    %v730 = vld [vmem:[%s2 + $0xd0] sm:$0xff]
    %v731 = vld [vmem:[%s2 + $0xd8] sm:$0xff]
    %v736 = vunpack.c.l.b16 %v722
    %v737 = vunpack.c.l.b16 %v723
    %v738 = vunpack.c.l.b16 %v724
    %v739 = vunpack.c.l.b16 %v725
    %v740 = vpack.c.b16 %v737, %v736
    %v741 = vpack.c.b16 %v739, %v738
    %v745 = vsel %vm28, %v726, 0
    %v748 = vsel %vm28, %v727, 0
    %750 = vmatpush.bf16.msra.mxu0 0
    %751 = vmatpush.bf16.msra.mxu0 0
    %752 = vmatpush.bf16.msra.mxu0 0
    %753 = vmatpush.bf16.msra.mxu0 0
    %754 = vmatpush.bf16.msra.mxu0 0
    %755 = vmatpush.bf16.msra.mxu0 0
    %756 = vmatpush.bf16.msra.mxu0 %v741
    %757 = vmatpush.bf16.msra.mxu0 %v740
    %758 = vmatmul.bf16.gmra.mxu0 %v745
    %v759 = vpop.f32.mrf.mxu0
    %v760 = vadd.f32 %v728, %v759
    %v761 = vpop.f32.mrf.mxu0
    %v762 = vadd.f32 %v729, %v761
    %763 = vmatmul.bf16.gmra.mxu0 %v748
    %v764 = vpop.f32.mrf.mxu0
    %v765 = vadd.f32 %v730, %v764
    %v766 = vpop.f32.mrf.mxu0
    %v767 = vadd.f32 %v731, %v766
    %768 = vdwg.mxu0
    %v769 = vrot.slane %v760, 7
    %v770 = vrot.slane %v762, 7
    %v771 = vrot.slane %v765, 7
    %v772 = vrot.slane %v767, 7
    %v773 = vlaneseq
    %v774 = vshrl.u32 %v773, 7
    %vm775 = vcmp.lt.s32.totalorder %v774, 1
    %v776 = vsel %vm775, %v771, %v772
    %v777 = vsel %vm775, %v770, %v771
    %v778 = vsel %vm775, %v769, %v770
    %v779 = vsel %vm775, %v772, %v769
    %v780 = vrot.slane %v760, 1
    %v781 = vrot.slane %v762, 1
    %v782 = vrot.slane %v765, 1
    %v783 = vrot.slane %v767, 1
    %vm784 = vcmp.lt.s32.totalorder %v774, 7
    %v785 = vsel %vm784, %v782, %v783
    %v786 = vsel %vm784, %v781, %v782
    %v787 = vsel %vm784, %v780, %v781
    %v788 = vsel %vm784, %v783, %v780
    %v789 = vld [vmem:[%s2 + $0xe0] sm:$0xff]
    %v790 = vld [vmem:[%s2 + $0xe8] sm:$0xff]
    %v791 = vld [vmem:[%s2 + $0xf0] sm:$0xff]
    %v792 = vld [vmem:[%s2 + $0xf8] sm:$0xff]
    %v793 = vmul.f32 %v779, %v789
    %v794 = vmul.f32 %v778, %v790
    %v795 = vmul.f32 %v777, %v791
    %v796 = vmul.f32 %v776, %v792
    %v797 = vld [vmem:[%s2 + $0x100] sm:$0xff]
    %v798 = vld [vmem:[%s2 + $0x108] sm:$0xff]
    %v799 = vld [vmem:[%s2 + $0x110] sm:$0xff]
    %v800 = vld [vmem:[%s2 + $0x118] sm:$0xff]
    %v801 = vmul.f32 %v760, %v797
    %v802 = vmul.f32 %v762, %v798
    %v803 = vmul.f32 %v765, %v799
    %v804 = vmul.f32 %v767, %v800
    %v805 = vadd.f32 %v793, %v801
    %v806 = vadd.f32 %v794, %v802
    %v807 = vadd.f32 %v795, %v803
    %v808 = vadd.f32 %v796, %v804
    %v809 = vld [vmem:[%s2 + $0x120] sm:$0xff]
    %v810 = vld [vmem:[%s2 + $0x128] sm:$0xff]
    %v811 = vld [vmem:[%s2 + $0x130] sm:$0xff]
    %v812 = vld [vmem:[%s2 + $0x138] sm:$0xff]
    %v813 = vmul.f32 %v787, %v809
    %v814 = vmul.f32 %v786, %v810
    %v815 = vmul.f32 %v785, %v811
    %v816 = vmul.f32 %v788, %v812
    %v817 = vadd.f32 %v805, %v813
    %v818 = vadd.f32 %v806, %v814
    %v819 = vadd.f32 %v807, %v815
    %v820 = vadd.f32 %v808, %v816
    %v821 = vld [vmem:[%s2 + $0x140] sm:$0xff]
    %v822 = vld [vmem:[%s2 + $0x148] sm:$0xff]
    %v823 = vld [vmem:[%s2 + $0x150] sm:$0xff]
    %v824 = vld [vmem:[%s2 + $0x158] sm:$0xff]
    %v825 = vadd.f32 %v817, %v821
    %v826 = vadd.f32 %v818, %v822
    %v827 = vadd.f32 %v819, %v823
    %v828 = vadd.f32 %v820, %v824
    %v829 = vmul.f32 %v825, 0.5
    %v830 = vmul.f32 %v826, 0.5
    %v831 = vmul.f32 %v827, 0.5
    %v832 = vmul.f32 %v828, 0.5
    %v833 = vmul.f32 %v825, %v825
    %v834 = vmul.f32 %v826, %v826
    %v835 = vmul.f32 %v827, %v827
    %v836 = vmul.f32 %v828, %v828
    %v837 = vmul.f32 %v833, %v825
    %v838 = vmul.f32 %v834, %v826
    %v839 = vmul.f32 %v835, %v827
    %v840 = vmul.f32 %v836, %v828
    %v841 = vmul.f32 %v837, 0.044715
    %v842 = vmul.f32 %v838, 0.044715
    %v843 = vmul.f32 %v839, 0.044715
    %v844 = vmul.f32 %v840, 0.044715
    %v845 = vadd.f32 %v825, %v841
    %v846 = vadd.f32 %v826, %v842
    %v847 = vadd.f32 %v827, %v843
    %v848 = vadd.f32 %v828, %v844
    %v849 = vmul.f32 %v845, 0.7978846
    %v850 = vmul.f32 %v846, 0.7978846
    %v851 = vmul.f32 %v847, 0.7978846
    %v852 = vmul.f32 %v848, 0.7978846
    %v853 = vtanh.pop %v849
    %v854 = vtanh.pop %v850
    %v855 = vtanh.pop %v851
    %v856 = vtanh.pop %v852
    %v857 = vadd.f32 %v853, 1.0
    %v858 = vadd.f32 %v854, 1.0
    %v859 = vadd.f32 %v855, 1.0
    %v860 = vadd.f32 %v856, 1.0
    %v861 = vmul.f32 %v829, %v857
    %v862 = vmul.f32 %v830, %v858
    %v863 = vmul.f32 %v831, %v859
    %v864 = vmul.f32 %v832, %v860
    %v865 = vld [vmem:[%s1 + $0x20] sm:$0xf]
    %v866 = vld [vmem:[%s1 + $0x24] sm:$0xf]
    %v867 = vld [vmem:[%s1 + $0x28] sm:$0xf]
    %v868 = vld [vmem:[%s1 + $0x2c] sm:$0xf]
    %v869 = vld [vmem:[%s1 + $0x30] sm:$0xf]
    %v870 = vld [vmem:[%s1 + $0x34] sm:$0xf]
    %v871 = vld [vmem:[%s1 + $0x38] sm:$0xf]
    %v872 = vld [vmem:[%s1 + $0x3c] sm:$0xf]
    %v873 = vpack.c.bf16 %v862, %v861
    %v874 = vpack.c.bf16 %v864, %v863
    %v875 = vld [vmem:[%s2 + $0x160] sm:$0xff]
    %v876 = vld [vmem:[%s2 + $0x168] sm:$0xff]
    %v877 = vld [vmem:[%s2 + $0x170] sm:$0xff]
    %v878 = vld [vmem:[%s2 + $0x178] sm:$0xff]
    %v887 = vunpack.c.l.b16 %v865
    %v888 = vunpack.c.l.b16 %v866
    %v889 = vunpack.c.l.b16 %v867
    %v890 = vunpack.c.l.b16 %v868
    %v891 = vunpack.c.l.b16 %v869
    %v892 = vunpack.c.l.b16 %v870
    %v893 = vunpack.c.l.b16 %v871
    %v894 = vunpack.c.l.b16 %v872
    %v895 = vpack.c.b16 %v888, %v887
    %v896 = vpack.c.b16 %v890, %v889
    %v897 = vpack.c.b16 %v892, %v891
    %v898 = vpack.c.b16 %v894, %v893
    %vm903 = vcmask 523264
    %v905 = vsel %vm903, %v873, 0
    %v908 = vsel %vm903, %v874, 0
    %910 = vmatpush.bf16.msra.mxu0 0
    %911 = vmatpush.bf16.msra.mxu0 0
    %912 = vmatpush.bf16.msra.mxu0 0
    %913 = vmatpush.bf16.msra.mxu0 0
    %914 = vmatpush.bf16.msra.mxu0 %v898
    %915 = vmatpush.bf16.msra.mxu0 %v897
    %916 = vmatpush.bf16.msra.mxu0 %v896
    %917 = vmatpush.bf16.msra.mxu0 %v895
    %918 = vmatmul.bf16.gmra.mxu0 %v905
    %v919 = vpop.f32.mrf.mxu0
    %v920 = vadd.f32 %v875, %v919
    %v921 = vpop.f32.mrf.mxu0
    %v922 = vadd.f32 %v876, %v921
    %923 = vmatmul.bf16.gmra.mxu0 %v908
    %v924 = vpop.f32.mrf.mxu0
    %v925 = vadd.f32 %v877, %v924
    %v926 = vpop.f32.mrf.mxu0
    %v927 = vadd.f32 %v878, %v926
    %928 = vdwg.mxu0
    %v929 = vadd.f32 %v920, %v614
    %v930 = vadd.f32 %v922, %v615
    %v931 = vadd.f32 %v925, %v616
    %v932 = vadd.f32 %v927, %v617
    %933 = vst.msk [vmem:[#allocation2] sm:$0xff] %vm28, %v929
    %934 = vst.msk [vmem:[#allocation2 + $0x8] sm:$0xff] %vm28, %v930
    %935 = vst.msk [vmem:[#allocation2 + $0x10] sm:$0xff] %vm28, %v931
    %936 = vst.msk [vmem:[#allocation2 + $0x18] sm:$0xff] %vm28, %v932
    // Predicated region
    $region14: #{tpu_custom_call.1} parent=1 // pred_check
      _
    $region15: #{tpu_custom_call.1} parent=1 // pred_check_branch
      %938 = sbr.rel (0) target = $region17
    $region16: #{tpu_custom_call.1} parent=1 // pred_region
      %940 = vsyncadd [#allocation3], 0
      %s941 = sshll.u32 [#allocation2], 4
      %s942 = int_to_ptr.vmem [resolvable:$true] %s941
      %s943 = sshll.u32 %s3, 4
      %s944 = int_to_ptr.hbm [resolvable:$true] %s943
      %949 = dma.vmem_to_hbm [thread:$0]  %s942, 512, %s944, [#allocation3], 128, 128, 8
    $region17: #{tpu_custom_call.1} parent=1 // pred_fallthru
      _
    // Predicated region
    $region18: #{tpu_custom_call.1} parent=1 // pred_check
      _
    $region19: #{tpu_custom_call.1} parent=1 // pred_check_branch
      %951 = sbr.rel (0) target = $region21
    $region20: #{tpu_custom_call.1} parent=1 // pred_region
      %953 = dma.done [#allocation3], 512
    $region21: #{tpu_custom_call.1} parent=1 // pred_fallthru
      _
    %954 = vsyncpa [#allocation3], 1

</llo_original>
